<compile_context>
chip_gen: v7x
topology: tpu7x:2x2x1
jax: 0.10.0
libtpu: 0.0.40
codegen_flags: <defaults>
</compile_context>

<pallas_src>
import functools

import jax
import jax.numpy as jnp
import numpy as np
from jax.experimental import pallas as pl
from jax.experimental.pallas import tpu as pltpu

_LANES = 128
_SUBLANES = 8


def _round_up(x, m):
    return (x + m - 1) // m * m


def _cdiv(a, b):
    return (a + b - 1) // b


def _corr2d_kernel(x_ref, w_ref, b_ref, o_ref, *, kh, kw):
    # x_ref: (Gt, Hp, LW)   VMEM  (Gt lane groups, each packing P images along lanes)
    # w_ref: (kh*kw,)       SMEM  (flattened kernel)
    # b_ref: (1,)           SMEM  (scalar bias)
    # o_ref: (Gt, Ho_p, LW) VMEM  (lane-dense padded output)
    gt, hp, lw = x_ref.shape
    ho_p = o_ref.shape[1]

    # Hoist all scalar (SMEM) reads out of the loops.
    wv = [w_ref[k] for k in range(kh * kw)]
    bias = b_ref[0]

    for g in range(gt):  # Gt is a small static int -> fully unrolled
        x = x_ref[g]  # (Hp, LW)
        # j-outer / i-inner: only ONE lane-shifted slab is live at a time (no scratch,
        # no extra full-tile stores).  kh partial accumulators give the VPU some ILP.
        accs = [None] * kh
        for j in range(kw):
            # Left lane shift by j: xj[:, c] == x[:, c + j] for c < lw - j.  Within an
            # image slot this never crosses into the neighbouring image because
            # Wo + kw - 1 == W; wrapped / cross-slot columns land only in rows/cols
            # that the wrapper slices off.
            xj = x if j == 0 else jnp.roll(x, -j, axis=1)
            for i in range(kh):
                tap = xj[i:i + ho_p, :] * wv[i * kw + j]   # sublane offset i is free
                accs[i] = tap if accs[i] is None else accs[i] + tap
        acc = accs[0]
        for i in range(1, kh):
            acc = acc + accs[i]
        o_ref[g] = acc + bias  # single lane-dense (unmasked) store per group


def conv2d_pallas(x, weight, bias):
    """Equivalent of Conv2D.forward: corr2d(x, weight) + bias.

    Accepts a single image (H, W) or a batch (B, H, W).
    """
    if x.ndim == 2:
        return conv2d_pallas(x[None], weight, bias)[0]

    B, H, W = x.shape
    kh, kw = weight.shape
    Ho, Wo = H - kh + 1, W - kw + 1

    # ---- lane-packing geometry -------------------------------------------------
    # P images share one 128-lane slab, each owning a slot of exactly W lanes.
    P = max(1, _LANES // W)
    LW = _LANES if W <= _LANES else _round_up(W, _LANES)   # lane width of one slab
    G = _cdiv(B, P)                                        # number of lane groups

    Ho_p = _round_up(Ho, _SUBLANES)                        # padded output rows
    Hp = _round_up(Ho_p + kh - 1, _SUBLANES)               # padded input rows (>= H)

    # ---- group tiling per grid step ---------------------------------------------
    # Target a few-hundred-KiB block per step (amortizes the ~0.35us/step overhead and
    # the DMA), but keep >= 2 grid steps whenever possible so both v7x TCs get work.
    bytes_per_group = (Hp + Ho_p) * LW * 4
    Gt = max(1, min(G, (512 * 1024) // max(bytes_per_group, 1), 16))
    if G > 1:
        Gt = min(Gt, _cdiv(G, 2))
    steps = _cdiv(G, Gt)
    Gp = steps * Gt

    # ---- pack (B, H, W) -> (Gp, Hp, LW): P images side by side per lane slab ------
    # TODO(synk): for a repeatedly-called conv, hoist this pack/unpack out of the hot
    # path (or fuse with producer/consumer); here it is one small HBM pass.
    xf = jnp.pad(x.astype(jnp.float32),
                 ((0, Gp * P - B), (0, Hp - H), (0, 0)))
    xf = xf.reshape(Gp, P, Hp, W).transpose(0, 2, 1, 3).reshape(Gp, Hp, P * W)
    x_pk = jnp.pad(xf, ((0, 0), (0, 0), (0, LW - P * W)))

    w_flat = weight.reshape(-1).astype(jnp.float32)     # (kh*kw,) -> SMEM
    b_flat = bias.reshape(-1).astype(jnp.float32)       # (1,)     -> SMEM

    out_pk = pl.pallas_call(
        functools.partial(_corr2d_kernel, kh=kh, kw=kw),
        out_shape=jax.ShapeDtypeStruct((Gp, Ho_p, LW), jnp.float32),
        grid=(steps,),
        in_specs=[
            pl.BlockSpec((Gt, Hp, LW), lambda gi: (gi, 0, 0)),        # Gt groups/step
            pl.BlockSpec(memory_space=pltpu.MemorySpace.SMEM),        # weights
            pl.BlockSpec(memory_space=pltpu.MemorySpace.SMEM),        # bias
        ],
        out_specs=pl.BlockSpec((Gt, Ho_p, LW), lambda gi: (gi, 0, 0)),
        compiler_params=pltpu.CompilerParams(
            dimension_semantics=("parallel",),   # batch axis shards across TCs on v7x
            # Blocks are capped (Gt <= 16) so double buffering stays far below the
            # 64 MiB physical VMEM of v7x; 32 MiB scoped limit is safe on all gens.
            vmem_limit_bytes=32 * 1024 * 1024,
        ),
    )(x_pk, w_flat, b_flat)

    # ---- unpack (Gp, Ho_p, LW) -> (B, Ho, Wo) (drops padded rows/cols/images) -----
    out = out_pk[:, :Ho, :P * W].reshape(Gp, Ho, P, W)
    out = out.transpose(0, 2, 1, 3).reshape(Gp * P, Ho, W)
    return out[:B, :, :Wo]


def conv2d_ref(x, weight, bias):
    """Pure-JAX reference (matches torch corr2d + bias)."""
    if x.ndim == 2:
        x = x[None]
    kh, kw = weight.shape
    B, H, W = x.shape
    Ho, Wo = H - kh + 1, W - kw + 1
    out = jnp.zeros((B, Ho, Wo), jnp.float32)
    for i in range(kh):
        for j in range(kw):
            out = out + x[:, i:i + Ho, j:j + Wo].astype(jnp.float32) * weight[i, j]
    return out + bias[0]


if __name__ == "__main__":
    key = jax.random.PRNGKey(0)
    kx, kw_key, kb_key, kx2 = jax.random.split(key, 4)

    # Test 1: spec-like shapes (batch of 16x16 images, 3x3 kernel, zero bias).
    B, H, W = 4, 16, 16
    x = jax.random.normal(kx, (B, H, W), dtype=jnp.float32)
    weight = jax.random.uniform(kw_key, (3, 3), dtype=jnp.float32)  # ~torch.rand
    bias = jnp.zeros((1,), dtype=jnp.float32)                       # ~torch.zeros(1)

    out = conv2d_pallas(x, weight, bias)
    jax.block_until_ready(out)
    np.testing.assert_allclose(np.asarray(out),
                               np.asarray(conv2d_ref(x, weight, bias)),
                               rtol=1e-5, atol=1e-5)

    # Test 2: non-dividing sizes -> partial lane slots, padded batch, 2 grid steps.
    B2, H2, W2 = 37, 12, 20
    x2 = jax.random.normal(kx2, (B2, H2, W2), dtype=jnp.float32)
    bias2 = jax.random.normal(kb_key, (1,), dtype=jnp.float32)
    out2 = conv2d_pallas(x2, weight, bias2)
    jax.block_until_ready(out2)
    np.testing.assert_allclose(np.asarray(out2),
                               np.asarray(conv2d_ref(x2, weight, bias2)),
                               rtol=1e-5, atol=1e-5)

    # Test 3: single-image path with a non-zero bias.
    out1 = conv2d_pallas(x[0], weight, bias2)
    jax.block_until_ready(out1)
    np.testing.assert_allclose(np.asarray(out1),
                               np.asarray(conv2d_ref(x[0], weight, bias2)[0]),
                               rtol=1e-5, atol=1e-5)

    print("KERNEL_OK")
</pallas_src>

<mosaic_0001>
module attributes {stable_mosaic.version = 11 : i64} {
  func.func @_corr2d_kernel(%arg0: i32, %arg1: memref<1x24x128xf32, #tpu.memory_space<vmem>>, %arg2: memref<9xf32, #tpu.memory_space<smem>>, %arg3: memref<1xf32, #tpu.memory_space<smem>>, %arg4: memref<1x16x128xf32, #tpu.memory_space<vmem>>) attributes {dimension_semantics = [#tpu.dimension_semantics<parallel>], iteration_bounds = array<i64: 1>, scalar_prefetch = 0 : i64, scratch_operands = 0 : i64, tpu.core_type = #tpu.core_type<tc>, window_params = [{transform_indices = @transform_0, window_bounds = array<i64: 1, 24, 128>}, {transform_indices = @transform_1, window_bounds = array<i64: 9>}, {transform_indices = @transform_2, window_bounds = array<i64: 1>}, {transform_indices = @transform_3, window_bounds = array<i64: 1, 16, 128>}]} {
    %c0 = arith.constant 0 : index
    %0 = memref.load %arg2[%c0] : memref<9xf32, #tpu.memory_space<smem>>
    %c1 = arith.constant 1 : index
    %1 = memref.load %arg2[%c1] : memref<9xf32, #tpu.memory_space<smem>>
    %c2 = arith.constant 2 : index
    %2 = memref.load %arg2[%c2] : memref<9xf32, #tpu.memory_space<smem>>
    %c3 = arith.constant 3 : index
    %3 = memref.load %arg2[%c3] : memref<9xf32, #tpu.memory_space<smem>>
    %c4 = arith.constant 4 : index
    %4 = memref.load %arg2[%c4] : memref<9xf32, #tpu.memory_space<smem>>
    %c5 = arith.constant 5 : index
    %5 = memref.load %arg2[%c5] : memref<9xf32, #tpu.memory_space<smem>>
    %c6 = arith.constant 6 : index
    %6 = memref.load %arg2[%c6] : memref<9xf32, #tpu.memory_space<smem>>
    %c7 = arith.constant 7 : index
    %7 = memref.load %arg2[%c7] : memref<9xf32, #tpu.memory_space<smem>>
    %c8 = arith.constant 8 : index
    %8 = memref.load %arg2[%c8] : memref<9xf32, #tpu.memory_space<smem>>
    %c0_0 = arith.constant 0 : index
    %9 = memref.load %arg3[%c0_0] : memref<1xf32, #tpu.memory_space<smem>>
    %c0_1 = arith.constant 0 : index
    %c0_2 = arith.constant 0 : index
    %c0_3 = arith.constant 0 : index
    %10 = vector.load %arg1[%c0_1, %c0_2, %c0_3] : memref<1x24x128xf32, #tpu.memory_space<vmem>>, vector<1x24x128xf32>
    %11 = vector.shape_cast %10 : vector<1x24x128xf32> to vector<24x128xf32>
    %12 = vector.extract_strided_slice %11 {offsets = [0, 0], sizes = [16, 128], strides = [1, 1]} : vector<24x128xf32> to vector<16x128xf32>
    %13 = vector.broadcast %0 : f32 to vector<16x128xf32>
    %14 = arith.mulf %12, %13 : vector<16x128xf32>
    %15 = vector.extract_strided_slice %11 {offsets = [1, 0], sizes = [16, 128], strides = [1, 1]} : vector<24x128xf32> to vector<16x128xf32>
    %16 = vector.broadcast %3 : f32 to vector<16x128xf32>
    %17 = arith.mulf %15, %16 : vector<16x128xf32>
    %18 = vector.extract_strided_slice %11 {offsets = [2, 0], sizes = [16, 128], strides = [1, 1]} : vector<24x128xf32> to vector<16x128xf32>
    %19 = vector.broadcast %6 : f32 to vector<16x128xf32>
    %20 = arith.mulf %18, %19 : vector<16x128xf32>
    %21 = vector.extract_strided_slice %11 {offsets = [0, 1], sizes = [24, 127], strides = [1, 1]} : vector<24x128xf32> to vector<24x127xf32>
    %22 = vector.extract_strided_slice %11 {offsets = [0, 0], sizes = [24, 1], strides = [1, 1]} : vector<24x128xf32> to vector<24x1xf32>
    %23 = tpu.concatenate %21, %22 in 1 : vector<24x127xf32>, vector<24x1xf32> -> vector<24x128xf32>
    %24 = vector.extract_strided_slice %23 {offsets = [0, 0], sizes = [16, 128], strides = [1, 1]} : vector<24x128xf32> to vector<16x128xf32>
    %25 = vector.broadcast %1 : f32 to vector<16x128xf32>
    %26 = arith.mulf %24, %25 : vector<16x128xf32>
    %27 = arith.addf %14, %26 : vector<16x128xf32>
    %28 = vector.extract_strided_slice %23 {offsets = [1, 0], sizes = [16, 128], strides = [1, 1]} : vector<24x128xf32> to vector<16x128xf32>
    %29 = vector.broadcast %4 : f32 to vector<16x128xf32>
    %30 = arith.mulf %28, %29 : vector<16x128xf32>
    %31 = arith.addf %17, %30 : vector<16x128xf32>
    %32 = vector.extract_strided_slice %23 {offsets = [2, 0], sizes = [16, 128], strides = [1, 1]} : vector<24x128xf32> to vector<16x128xf32>
    %33 = vector.broadcast %7 : f32 to vector<16x128xf32>
    %34 = arith.mulf %32, %33 : vector<16x128xf32>
    %35 = arith.addf %20, %34 : vector<16x128xf32>
    %36 = vector.extract_strided_slice %11 {offsets = [0, 2], sizes = [24, 126], strides = [1, 1]} : vector<24x128xf32> to vector<24x126xf32>
    %37 = vector.extract_strided_slice %11 {offsets = [0, 0], sizes = [24, 2], strides = [1, 1]} : vector<24x128xf32> to vector<24x2xf32>
    %38 = tpu.concatenate %36, %37 in 1 : vector<24x126xf32>, vector<24x2xf32> -> vector<24x128xf32>
    %39 = vector.extract_strided_slice %38 {offsets = [0, 0], sizes = [16, 128], strides = [1, 1]} : vector<24x128xf32> to vector<16x128xf32>
    %40 = vector.broadcast %2 : f32 to vector<16x128xf32>
    %41 = arith.mulf %39, %40 : vector<16x128xf32>
    %42 = arith.addf %27, %41 : vector<16x128xf32>
    %43 = vector.extract_strided_slice %38 {offsets = [1, 0], sizes = [16, 128], strides = [1, 1]} : vector<24x128xf32> to vector<16x128xf32>
    %44 = vector.broadcast %5 : f32 to vector<16x128xf32>
    %45 = arith.mulf %43, %44 : vector<16x128xf32>
    %46 = arith.addf %31, %45 : vector<16x128xf32>
    %47 = vector.extract_strided_slice %38 {offsets = [2, 0], sizes = [16, 128], strides = [1, 1]} : vector<24x128xf32> to vector<16x128xf32>
    %48 = vector.broadcast %8 : f32 to vector<16x128xf32>
    %49 = arith.mulf %47, %48 : vector<16x128xf32>
    %50 = arith.addf %35, %49 : vector<16x128xf32>
    %51 = arith.addf %42, %46 : vector<16x128xf32>
    %52 = arith.addf %51, %50 : vector<16x128xf32>
    %53 = vector.broadcast %9 : f32 to vector<16x128xf32>
    %54 = arith.addf %52, %53 : vector<16x128xf32>
    %c0_4 = arith.constant 0 : index
    %c0_5 = arith.constant 0 : index
    %c0_6 = arith.constant 0 : index
    %55 = vector.load %arg4[%c0_4, %c0_5, %c0_6] : memref<1x16x128xf32, #tpu.memory_space<vmem>>, vector<1x16x128xf32>
    %56 = vector.shape_cast %55 : vector<1x16x128xf32> to vector<16x128xf32>
    %57 = vector.shape_cast %54 : vector<16x128xf32> to vector<1x16x128xf32>
    tpu.vector_store %arg4[%c0_4, %c0_5, %c0_6], %57 {strides = array<i32>} : memref<1x16x128xf32, #tpu.memory_space<vmem>>, vector<1x16x128xf32>,
    return
  }
  func.func @transform_0(%arg0: i32) -> (i32, i32, i32) {
    %c0_i32 = arith.constant 0 : i32
    %c0_i32_0 = arith.constant 0 : i32
    %c0_i32_1 = arith.constant 0 : i32
    return %arg0, %c0_i32, %c0_i32_0 : i32, i32, i32
  }
  func.func @transform_1(%arg0: i32) -> i32 {
    %c0_i32 = arith.constant 0 : i32
    %c0_i32_0 = arith.constant 0 : i32
    return %c0_i32 : i32
  }
  func.func @transform_2(%arg0: i32) -> i32 {
    %c0_i32 = arith.constant 0 : i32
    %c0_i32_0 = arith.constant 0 : i32
    return %c0_i32 : i32
  }
  func.func @transform_3(%arg0: i32) -> (i32, i32, i32) {
    %c0_i32 = arith.constant 0 : i32
    %c0_i32_0 = arith.constant 0 : i32
    %c0_i32_1 = arith.constant 0 : i32
    return %arg0, %c0_i32, %c0_i32_0 : i32, i32, i32
  }
}

</mosaic_0001>

<llo_original>
// kernel: tpu_custom_call.1
$region0: #{tpu_custom_call.1}
  #allocation0 [shape = 'u32[]', space=smem, size = 0x4, offset = 0x4, fixed_abs, tag = 'smem constant byte address 0x4 - core index']
  #allocation1 [shape = 'u32[144,128]{1,0:T(1,128)}', space=vmem, size = 0x12000, scoped, tag = 'internal scratch']
  #allocation2 [shape = 'f32[1]{0:T(128)S(6)}', space=smem, size = 0x200, scoped, tag = 'scoped memory for tpu_custom_call.1']
  %s0 = inlined_call_operand.hbm [shape: f32[1,24,128], index: 0, kind: input, shape index: {}]
  %s1 = inlined_call_operand.vmem [shape: f32[9], index: 1, kind: input, shape index: {}]
  %s2 = inlined_call_operand.<no memory space> [shape: f32[1], index: 2, kind: input, shape index: {}]
  %s3 = inlined_call_operand.hbm [shape: f32[1,16,128], index: 3, kind: output, shape index: {}]
  %s4 = sld [smem:[#allocation0]]
  $region30: #{tpu_custom_call.1} parent=0
    _
  %s6 = ssub.s32 1, %s4
  %s7 = scalar_select 0, %s6, %s4
  %8 = sst [smem:[#allocation2]] %s2
  $region1: #{tpu_custom_call.1} parent=0
    #allocation3 [shape = 'u8[12288]{0}', space=vmem, size = 0x3000, scoped, tag = 'input window, operand 0, single buffered']
    #allocation4 [shape = 's32[1]{0}', space=sflag, size = 0x4, scoped, tag = 'scoped memory for tpu_custom_call.1']
    #allocation5 [shape = 's32[1]{0}', space=sflag, size = 0x4, scoped, tag = 'scoped memory for tpu_custom_call.1']
    #allocation6 [shape = 's32[1]{0}', space=sflag, size = 0x4, scoped, tag = 'scoped memory for tpu_custom_call.1']
    #allocation7 [shape = 'u8[512]{0}', space=smem, size = 0x200, scoped, tag = 'input window, operand 1, single buffered']
    #allocation8 [shape = 'u8[8192]{0}', space=vmem, size = 0x2000, scoped, tag = 'output window, operand 0, single buffered']
    %9 = vsyncpa [#allocation4], 0
    %10 = vsyncpa [#allocation6], 0
    %11 = vsyncpa [#allocation5], 0
    // Predicated region
    $region2: #{tpu_custom_call.1} parent=1 // pred_check
      _
    $region3: #{tpu_custom_call.1} parent=1 // pred_check_branch
      %13 = sbr.rel (0) target = $region5
    $region4: #{tpu_custom_call.1} parent=1 // pred_region
      %s15 = ssub.s32 384, 384
      %16 = vsyncadd [#allocation4], %s15
      %s17 = sshll.u32 [#allocation3], 4
      %s18 = int_to_ptr.vmem [resolvable:$true] %s17
      %23 = dma.hbm_to_vmem [thread:$0]  %s0, 384, %s18, [#allocation4], 128, 128, 8
    $region5: #{tpu_custom_call.1} parent=1 // pred_fallthru
      _
    // Predicated region
    $region6: #{tpu_custom_call.1} parent=1 // pred_check
      _
    $region7: #{tpu_custom_call.1} parent=1 // pred_check_branch
      %25 = sbr.rel (0) target = $region9
    $region8: #{tpu_custom_call.1} parent=1 // pred_region
      %s27 = ssub.s32 16, 16
      %28 = vsyncadd [#allocation6], %s27
      %s30 = sshll.u32 %s1, 4
      %s31 = int_to_ptr.vmem [resolvable:$true] %s30
      %33 = dma.vmem_to_smem %s31, 16, [#allocation7], [#allocation6]
    $region9: #{tpu_custom_call.1} parent=1 // pred_fallthru
      _
    // Predicated region
    $region10: #{tpu_custom_call.1} parent=1 // pred_check
      _
    $region11: #{tpu_custom_call.1} parent=1 // pred_check_branch
      %35 = sbr.rel (0) target = $region13
    $region12: #{tpu_custom_call.1} parent=1 // pred_region
      _
    $region13: #{tpu_custom_call.1} parent=1 // pred_fallthru
      _
    // Predicated region
    $region14: #{tpu_custom_call.1} parent=1 // pred_check
      _
    $region15: #{tpu_custom_call.1} parent=1 // pred_check_branch
      %37 = sbr.rel (0) target = $region17
    $region16: #{tpu_custom_call.1} parent=1 // pred_region
      %38 = dma.done [#allocation4], 384
    $region17: #{tpu_custom_call.1} parent=1 // pred_fallthru
      _
    // Predicated region
    $region18: #{tpu_custom_call.1} parent=1 // pred_check
      _
    $region19: #{tpu_custom_call.1} parent=1 // pred_check_branch
      %40 = sbr.rel (0) target = $region21
    $region20: #{tpu_custom_call.1} parent=1 // pred_region
      %41 = dma.done [#allocation6], 16
    $region21: #{tpu_custom_call.1} parent=1 // pred_fallthru
      _
    %42 = sfence
    %s43 = sld [smem:[#allocation7]]
    %s44 = sld [smem:[#allocation7 + $0x1]]
    %s45 = sld [smem:[#allocation7 + $0x2]]
    %s46 = sld [smem:[#allocation7 + $0x3]]
    %s47 = sld [smem:[#allocation7 + $0x4]]
    %s48 = sld [smem:[#allocation7 + $0x5]]
    %s49 = sld [smem:[#allocation7 + $0x6]]
    %s50 = sld [smem:[#allocation7 + $0x7]]
    %s51 = sld [smem:[#allocation7 + $0x8]]
    %s52 = sld [smem:[#allocation2]]
    %v53 = vld [vmem:[#allocation3] sm:$0xff]
    %v54 = vld [vmem:[#allocation3 + $0x8] sm:$0xff]
    %v55 = vld [vmem:[#allocation3 + $0x10] sm:$0xff]
    %v56 = vstv %s43
    %v57 = vmul.f32 %v53, %v56
    %v58 = vmul.f32 %v54, %v56
    %v59 = vstv %s46
    %v60 = vmul.f32 %v53, %v59
    %v61 = vmul.f32 %v54, %v59
    %v62 = vmul.f32 %v55, %v59
    %v63 = vstv %s49
    %v64 = vmul.f32 %v53, %v63
    %v65 = vmul.f32 %v54, %v63
    %v66 = vmul.f32 %v55, %v63
    %70 = vrot.lane.b32.xlu0 %v53, 127
    %v71 = vpop.permute.xlu0 %70
    %72 = vrot.lane.b32.xlu0 %v54, 127
    %v73 = vpop.permute.xlu0 %72
    %74 = vrot.lane.b32.xlu0 %v55, 127
    %v75 = vpop.permute.xlu0 %74
    %v79 = vstv %s44
    %v80 = vmul.f32 %v71, %v79
    %v81 = vmul.f32 %v73, %v79
    %v82 = vadd.f32 %v57, %v80
    %v83 = vadd.f32 %v58, %v81
    %v84 = vstv %s47
    %v85 = vmul.f32 %v71, %v84
    %v86 = vmul.f32 %v73, %v84
    %v87 = vmul.f32 %v75, %v84
    %v88 = vadd.f32 %v60, %v85
    %v89 = vadd.f32 %v61, %v86
    %v90 = vadd.f32 %v62, %v87
    %v91 = vstv %s50
    %v92 = vmul.f32 %v71, %v91
    %v93 = vmul.f32 %v73, %v91
    %v94 = vmul.f32 %v75, %v91
    %v95 = vadd.f32 %v64, %v92
    %v96 = vadd.f32 %v65, %v93
    %v97 = vadd.f32 %v66, %v94
    %98 = vrot.lane.b32.xlu0 %v53, 126
    %v99 = vpop.permute.xlu0 %98
    %100 = vrot.lane.b32.xlu0 %v54, 126
    %v101 = vpop.permute.xlu0 %100
    %102 = vrot.lane.b32.xlu0 %v55, 126
    %v103 = vpop.permute.xlu0 %102
    %v107 = vstv %s45
    %v108 = vmul.f32 %v99, %v107
    %v109 = vmul.f32 %v101, %v107
    %v110 = vadd.f32 %v82, %v108
    %v111 = vadd.f32 %v83, %v109
    %v112 = vstv %s48
    %v113 = vmul.f32 %v99, %v112
    %v114 = vmul.f32 %v101, %v112
    %v115 = vmul.f32 %v103, %v112
    %v116 = vadd.f32 %v88, %v113
    %v117 = vadd.f32 %v89, %v114
    %v118 = vadd.f32 %v90, %v115
    %v119 = vstv %s51
    %v120 = vmul.f32 %v99, %v119
    %v121 = vmul.f32 %v101, %v119
    %v122 = vmul.f32 %v103, %v119
    %v123 = vadd.f32 %v95, %v120
    %v124 = vadd.f32 %v96, %v121
    %v125 = vadd.f32 %v97, %v122
    %vm129 = vcmask 1046528
    %v130 = vrot.slane %v116, 1
    %v131 = vrot.slane %v117, 1
    %v132 = vsel %vm129, %v130, %v131
    %v133 = vrot.slane %v118, 1
    %v134 = vsel %vm129, %v131, %v133
    %v137 = vadd.f32 %v110, %v132
    %v138 = vadd.f32 %v111, %v134
    %vm142 = vcmask 1045504
    %v143 = vrot.slane %v123, 2
    %v144 = vrot.slane %v124, 2
    %v145 = vsel %vm142, %v143, %v144
    %v146 = vrot.slane %v125, 2
    %v147 = vsel %vm142, %v144, %v146
    %v150 = vadd.f32 %v137, %v145
    %v151 = vadd.f32 %v138, %v147
    %v152 = vstv %s52
    %v153 = vadd.f32 %v150, %v152
    %v154 = vadd.f32 %v151, %v152
    %155 = vst [vmem:[#allocation8] sm:$0xff] %v153
    %156 = vst [vmem:[#allocation8 + $0x8] sm:$0xff] %v154
    // Predicated region
    $region22: #{tpu_custom_call.1} parent=1 // pred_check
      _
    $region23: #{tpu_custom_call.1} parent=1 // pred_check_branch
      %158 = sbr.rel (0) target = $region25
    $region24: #{tpu_custom_call.1} parent=1 // pred_region
      %s160 = ssub.s32 256, 256
      %161 = vsyncadd [#allocation5], %s160
      %s162 = sshll.u32 [#allocation8], 4
      %s163 = int_to_ptr.vmem [resolvable:$true] %s162
      %168 = dma.vmem_to_hbm [thread:$0]  %s163, 256, %s3, [#allocation5], 128, 128, 8
    $region25: #{tpu_custom_call.1} parent=1 // pred_fallthru
      _
    // Predicated region
    $region26: #{tpu_custom_call.1} parent=1 // pred_check
      _
    $region27: #{tpu_custom_call.1} parent=1 // pred_check_branch
      %170 = sbr.rel (0) target = $region29
    $region28: #{tpu_custom_call.1} parent=1 // pred_region
      %171 = dma.done [#allocation5], 256
    $region29: #{tpu_custom_call.1} parent=1 // pred_fallthru
      _
    %172 = vsyncpa [#allocation4], 1
    %173 = vsyncpa [#allocation5], 1
    %174 = vsyncpa [#allocation6], 1

</llo_original>
